<compile_context>
chip_gen: v6e
topology: v6e:2x2x1
jax: 0.10.0
libtpu: 0.0.40
codegen_flags: <defaults>
</compile_context>

<pallas_src>
import functools

import jax
import jax.numpy as jnp
from jax import lax
from jax.experimental import pallas as pl
from jax.experimental.pallas import tpu as pltpu


# ----------------------------- tile selection --------------------------------

def _pick_rows(m, cin, cout, budget_bytes=4 << 20,
               candidates=(4096, 2048, 1024, 512, 256, 128, 64, 32, 16, 8)):
    """Largest row tile dividing m whose double-buffered working set fits."""
    for t in candidates:
        if m % t == 0 and 2 * t * (cin + 2 * cout) * 4 <= budget_bytes:
            return t
    return m


def _pick_spatial_tile(ho, wo, cout, budget_bytes=64 << 10):
    """Largest divisor of ho whose (th*wo, cout) f32 accumulator fits budget."""
    best = 1
    for th in range(1, ho + 1):
        if ho % th == 0 and th * wo * cout * 4 <= budget_bytes:
            best = th
    return best


# ----------------------------- Pallas kernels --------------------------------

def _mm_bn_kernel(x_ref, w_ref, s_ref, b_ref, o_ref, *, relu):
    # (tm, Cin) @ (Cin, Cout), then per-channel scale/bias, optional ReLU.
    y = jnp.dot(x_ref[...], w_ref[...], preferred_element_type=jnp.float32)
    y = y * s_ref[...] + b_ref[...]
    if relu:
        y = jnp.maximum(y, 0.0)
    o_ref[...] = y.astype(o_ref.dtype)


def _mm_bn_add_relu_kernel(x_ref, w_ref, s_ref, b_ref, sc_ref, o_ref):
    # Last 1x1 conv + folded BN, fused with residual add + final ReLU.
    y = jnp.dot(x_ref[...], w_ref[...], preferred_element_type=jnp.float32)
    y = y * s_ref[...] + b_ref[...]
    y = y + sc_ref[...].astype(jnp.float32)
    o_ref[...] = jnp.maximum(y, 0.0).astype(o_ref.dtype)


def _conv3x3_bn_relu_kernel(xp_ref, w_ref, s_ref, b_ref, o_ref):
    # xp_ref: (1, Hp, Wp, Cin) full padded image (resident across the tile axis)
    # w_ref : (3, 3, Cin, Cout)
    # o_ref : (1, TH, Wo, Cout) one spatial row-tile of the output
    _, TH, Wo, Co = o_ref.shape
    Cin = xp_ref.shape[-1]
    t = pl.program_id(1)
    r0 = pl.multiple_of(t * TH, TH)
    acc = jnp.zeros((TH * Wo, Co), jnp.float32)
    for kh in range(3):
        for kw in range(3):
            patch = xp_ref[0, pl.ds(r0 + kh, TH), kw:kw + Wo, :]
            acc = acc + jnp.dot(patch.reshape(TH * Wo, Cin), w_ref[kh, kw],
                                preferred_element_type=jnp.float32)
    y = acc * s_ref[...] + b_ref[...]
    y = jnp.maximum(y, 0.0)
    o_ref[...] = y.reshape(1, TH, Wo, Co).astype(o_ref.dtype)


# ----------------------------- wrappers ---------------------------------------

def conv1x1_bn(x_nhwc, w_io, scale, bias, stride, padding, relu, shortcut=None):
    """1x1 conv + folded BN (+ optional ReLU). Optionally fuses residual
    add + final ReLU when `shortcut` (same output shape, NHWC) is given.

    Stride is applied by subsampling the input BEFORE the matmul (exact for
    1x1 kernels), so no wasted compute or output writes.
    """
    if padding:
        x_nhwc = jnp.pad(
            x_nhwc, ((0, 0), (padding, padding), (padding, padding), (0, 0)))
    if stride > 1:
        x_nhwc = x_nhwc[:, ::stride, ::stride, :]
    N, H, W, Cin = x_nhwc.shape
    Cout = w_io.shape[1]
    M = N * H * W
    xf = x_nhwc.reshape(M, Cin)
    tm = _pick_rows(M, Cin, Cout)

    base_specs = [
        pl.BlockSpec((tm, Cin), lambda i: (i, 0)),
        pl.BlockSpec((Cin, Cout), lambda i: (0, 0)),
        pl.BlockSpec((1, Cout), lambda i: (0, 0)),
        pl.BlockSpec((1, Cout), lambda i: (0, 0)),
    ]
    args = [xf, w_io, scale.reshape(1, Cout), bias.reshape(1, Cout)]

    if shortcut is None:
        kernel = functools.partial(_mm_bn_kernel, relu=relu)
        in_specs = base_specs
    else:
        kernel = _mm_bn_add_relu_kernel
        in_specs = base_specs + [pl.BlockSpec((tm, Cout), lambda i: (i, 0))]
        args = args + [shortcut.reshape(M, Cout)]

    out = pl.pallas_call(
        kernel,
        out_shape=jax.ShapeDtypeStruct((M, Cout), x_nhwc.dtype),
        grid=(M // tm,),
        in_specs=in_specs,
        out_specs=pl.BlockSpec((tm, Cout), lambda i: (i, 0)),
        compiler_params=pltpu.CompilerParams(dimension_semantics=("parallel",)),
    )(*args)
    return out.reshape(N, H, W, Cout)


def conv3x3_bn_relu(x_nhwc, w_hwio, scale, bias, stride, padding):
    """3x3 conv + folded BN + ReLU, spatially tiled. w_hwio: (3,3,Cin,Cout)."""
    N, H, W, Cin = x_nhwc.shape
    Cout = w_hwio.shape[-1]
    xp = jnp.pad(
        x_nhwc, ((0, 0), (padding, padding), (padding, padding), (0, 0)))
    Hp, Wp = xp.shape[1], xp.shape[2]
    Ho, Wo = Hp - 2, Wp - 2  # stride-1 output, subsample below if stride > 1
    th = _pick_spatial_tile(Ho, Wo, Cout)

    out = pl.pallas_call(
        _conv3x3_bn_relu_kernel,
        out_shape=jax.ShapeDtypeStruct((N, Ho, Wo, Cout), x_nhwc.dtype),
        grid=(N, Ho // th),
        in_specs=[
            # Full padded image per batch element; block index is constant over
            # the tile axis, so it is DMA'd once per n and stays resident.
            pl.BlockSpec((1, Hp, Wp, Cin), lambda n, t: (n, 0, 0, 0)),
            pl.BlockSpec((3, 3, Cin, Cout), lambda n, t: (0, 0, 0, 0)),
            pl.BlockSpec((1, Cout), lambda n, t: (0, 0)),
            pl.BlockSpec((1, Cout), lambda n, t: (0, 0)),
        ],
        out_specs=pl.BlockSpec((1, th, Wo, Cout), lambda n, t: (n, t, 0, 0)),
        compiler_params=pltpu.CompilerParams(
            dimension_semantics=("parallel", "arbitrary")),
    )(xp, w_hwio, scale.reshape(1, Cout), bias.reshape(1, Cout))
    if stride > 1:
        # TODO(synk): compute only strided rows/cols in-kernel for stride > 1.
        out = out[:, ::stride, ::stride, :]
    return out


# ----------------------------- parameters ------------------------------------

def _fold_bn(bn, eps=1e-5):
    gamma, beta, mean, var = bn
    scale = gamma / jnp.sqrt(var + eps)
    bias = beta - mean * scale
    return scale, bias


def init_params(key, in_channels, out_channels, first):
    exp = out_channels * 4
    ks = jax.random.split(key, 8)

    def conv_w(k, co, ci, kh, kw):
        fan_in = ci * kh * kw
        return jax.random.normal(k, (co, ci, kh, kw), jnp.float32) / jnp.sqrt(
            jnp.float32(fan_in))

    def bn_p(k, c):
        k1, k2, k3, k4 = jax.random.split(k, 4)
        gamma = jax.random.uniform(k1, (c,), jnp.float32, 0.5, 1.5)
        beta = jax.random.normal(k2, (c,), jnp.float32) * 0.1
        mean = jax.random.normal(k3, (c,), jnp.float32) * 0.1
        var = jax.random.uniform(k4, (c,), jnp.float32, 0.5, 1.5)
        return gamma, beta, mean, var

    p = {
        "w1": conv_w(ks[0], out_channels, in_channels, 1, 1),
        "bn1": bn_p(ks[1], out_channels),
        "w2": conv_w(ks[2], out_channels, out_channels, 3, 3),
        "bn2": bn_p(ks[3], out_channels),
        "w3": conv_w(ks[4], exp, out_channels, 1, 1),
        "bn3": bn_p(ks[5], exp),
    }
    if first:
        p["ws"] = conv_w(ks[6], exp, in_channels, 1, 1)
        p["bns"] = bn_p(ks[7], exp)
    return p


# ----------------------------- forward (Pallas path) --------------------------

def bottleneck_forward(x_nchw, p, stride=(1, 1, 1), padding=(0, 1, 0),
                       first=False):
    x = jnp.transpose(x_nchw, (0, 2, 3, 1))  # NCHW -> NHWC
    s1, b1 = _fold_bn(p["bn1"])
    s2, b2 = _fold_bn(p["bn2"])
    s3, b3 = _fold_bn(p["bn3"])
    w1 = p["w1"][:, :, 0, 0].T                    # (Cin, Cout)
    w2 = jnp.transpose(p["w2"], (2, 3, 1, 0))     # (3, 3, Cin, Cout)
    w3 = p["w3"][:, :, 0, 0].T

    h = conv1x1_bn(x, w1, s1, b1, stride[0], padding[0], relu=True)
    h = conv3x3_bn_relu(h, w2, s2, b2, stride[1], padding[1])

    if first:
        ss, bs = _fold_bn(p["bns"])
        ws = p["ws"][:, :, 0, 0].T
        sc = conv1x1_bn(x, ws, ss, bs, stride[1], 0, relu=False)
    else:
        sc = x

    # Last 1x1 conv + BN fused with residual add + final ReLU in one kernel.
    out = conv1x1_bn(h, w3, s3, b3, stride[2], padding[2], relu=True,
                     shortcut=sc)
    return jnp.transpose(out, (0, 3, 1, 2))  # NHWC -> NCHW


# ----------------------------- pure-JAX reference -----------------------------

def ref_forward(x, p, stride, padding, first):
    def conv(xx, w, s, pad):
        return lax.conv_general_dilated(
            xx, w, (s, s), [(pad, pad), (pad, pad)],
            dimension_numbers=("NCHW", "OIHW", "NCHW"),
            precision=lax.Precision.HIGHEST)

    def bn(xx, bnp):
        sc, bi = _fold_bn(bnp)
        return xx * sc[None, :, None, None] + bi[None, :, None, None]

    h = jax.nn.relu(bn(conv(x, p["w1"], stride[0], padding[0]), p["bn1"]))
    h = jax.nn.relu(bn(conv(h, p["w2"], stride[1], padding[1]), p["bn2"]))
    h = bn(conv(h, p["w3"], stride[2], padding[2]), p["bn3"])
    sc = bn(conv(x, p["ws"], stride[1], 0), p["bns"]) if first else x
    return jax.nn.relu(h + sc)


# ----------------------------- main -------------------------------------------

if __name__ == "__main__":
    key = jax.random.PRNGKey(0)
    kx1, kp1, kx2, kp2, kx3, kp3 = jax.random.split(key, 6)

    # Config 1: projection shortcut (first=True), in=8, out=4 (expanded=16).
    x1 = jax.random.normal(kx1, (2, 8, 16, 16), jnp.float32)
    p1 = init_params(kp1, 8, 4, first=True)
    y1 = jax.block_until_ready(
        bottleneck_forward(x1, p1, (1, 1, 1), (0, 1, 0), first=True))
    r1 = ref_forward(x1, p1, (1, 1, 1), (0, 1, 0), True)
    assert y1.shape == (2, 16, 16, 16)
    assert jnp.allclose(y1, r1, rtol=1e-3, atol=1e-3), float(
        jnp.max(jnp.abs(y1 - r1)))

    # Config 2: identity shortcut (first=False), in=16, out=4.
    x2 = jax.random.normal(kx2, (2, 16, 16, 16), jnp.float32)
    p2 = init_params(kp2, 16, 4, first=False)
    y2 = jax.block_until_ready(
        bottleneck_forward(x2, p2, (1, 1, 1), (0, 1, 0), first=False))
    r2 = ref_forward(x2, p2, (1, 1, 1), (0, 1, 0), False)
    assert y2.shape == (2, 16, 16, 16)
    assert jnp.allclose(y2, r2, rtol=1e-3, atol=1e-3), float(
        jnp.max(jnp.abs(y2 - r2)))

    # Config 3: downsampling block (stride in middle conv), first=True.
    x3 = jax.random.normal(kx3, (2, 8, 16, 16), jnp.float32)
    p3 = init_params(kp3, 8, 4, first=True)
    y3 = jax.block_until_ready(
        bottleneck_forward(x3, p3, (1, 2, 1), (0, 1, 0), first=True))
    r3 = ref_forward(x3, p3, (1, 2, 1), (0, 1, 0), True)
    assert y3.shape == (2, 16, 8, 8)
    assert jnp.allclose(y3, r3, rtol=1e-3, atol=1e-3), float(
        jnp.max(jnp.abs(y3 - r3)))

    print("KERNEL_OK")
</pallas_src>

<mosaic_0001>
module attributes {stable_mosaic.version = 11 : i64} {
  func.func @_mm_bn_kernel(%arg0: i32, %arg1: memref<512x8xf32, #tpu.memory_space<vmem>>, %arg2: memref<8x4xf32, #tpu.memory_space<vmem>>, %arg3: memref<1x4xf32, #tpu.memory_space<vmem>>, %arg4: memref<1x4xf32, #tpu.memory_space<vmem>>, %arg5: memref<512x4xf32, #tpu.memory_space<vmem>>) attributes {dimension_semantics = [#tpu.dimension_semantics<parallel>], iteration_bounds = array<i64: 1>, scalar_prefetch = 0 : i64, scratch_operands = 0 : i64, tpu.core_type = #tpu.core_type<tc>, window_params = [{transform_indices = @transform_0, window_bounds = array<i64: 512, 8>}, {pipeline_mode = #tpu.pipeline_mode<synchronous>, transform_indices = @transform_1, window_bounds = array<i64: 8, 4>}, {pipeline_mode = #tpu.pipeline_mode<synchronous>, transform_indices = @transform_2, window_bounds = array<i64: 1, 4>}, {pipeline_mode = #tpu.pipeline_mode<synchronous>, transform_indices = @transform_3, window_bounds = array<i64: 1, 4>}, {transform_indices = @transform_4, window_bounds = array<i64: 512, 4>}]} {
    %c0 = arith.constant 0 : index
    %c0_0 = arith.constant 0 : index
    %0 = vector.load %arg1[%c0, %c0_0] : memref<512x8xf32, #tpu.memory_space<vmem>>, vector<512x8xf32>
    %c0_1 = arith.constant 0 : index
    %c0_2 = arith.constant 0 : index
    %1 = vector.load %arg2[%c0_1, %c0_2] : memref<8x4xf32, #tpu.memory_space<vmem>>, vector<8x4xf32>
    %cst = arith.constant dense<0.000000e+00> : vector<512x4xf32>
    %2 = tpu.matmul %0, %1, %cst {dimension_numbers = #tpu.dot_dimension_numbers<[1], [0], [0], [1], [0, 0, 1, 1], [], []>} : vector<512x8xf32>, vector<8x4xf32>, vector<512x4xf32> -> vector<512x4xf32>
    %c0_3 = arith.constant 0 : index
    %c0_4 = arith.constant 0 : index
    %3 = vector.load %arg3[%c0_3, %c0_4] : memref<1x4xf32, #tpu.memory_space<vmem>>, vector<1x4xf32>
    %4 = vector.broadcast %3 : vector<1x4xf32> to vector<512x4xf32>
    %5 = arith.mulf %2, %4 : vector<512x4xf32>
    %c0_5 = arith.constant 0 : index
    %c0_6 = arith.constant 0 : index
    %6 = vector.load %arg4[%c0_5, %c0_6] : memref<1x4xf32, #tpu.memory_space<vmem>>, vector<1x4xf32>
    %7 = vector.broadcast %6 : vector<1x4xf32> to vector<512x4xf32>
    %8 = arith.addf %5, %7 : vector<512x4xf32>
    %cst_7 = arith.constant 0.000000e+00 : f32
    %9 = vector.broadcast %cst_7 : f32 to vector<512x4xf32>
    %10 = arith.maximumf %8, %9 : vector<512x4xf32>
    %c0_8 = arith.constant 0 : index
    %c0_9 = arith.constant 0 : index
    %11 = vector.load %arg5[%c0_8, %c0_9] : memref<512x4xf32, #tpu.memory_space<vmem>>, vector<512x4xf32>
    tpu.vector_store %arg5[%c0_8, %c0_9], %10 {strides = array<i32>} : memref<512x4xf32, #tpu.memory_space<vmem>>, vector<512x4xf32>,
    return
  }
  func.func @transform_0(%arg0: i32) -> (i32, i32) {
    %c0_i32 = arith.constant 0 : i32
    %c0_i32_0 = arith.constant 0 : i32
    return %arg0, %c0_i32 : i32, i32
  }
  func.func @transform_1(%arg0: i32) -> (i32, i32) {
    %c0_i32 = arith.constant 0 : i32
    %c0_i32_0 = arith.constant 0 : i32
    %c0_i32_1 = arith.constant 0 : i32
    return %c0_i32, %c0_i32_0 : i32, i32
  }
  func.func @transform_2(%arg0: i32) -> (i32, i32) {
    %c0_i32 = arith.constant 0 : i32
    %c0_i32_0 = arith.constant 0 : i32
    %c0_i32_1 = arith.constant 0 : i32
    return %c0_i32, %c0_i32_0 : i32, i32
  }
  func.func @transform_3(%arg0: i32) -> (i32, i32) {
    %c0_i32 = arith.constant 0 : i32
    %c0_i32_0 = arith.constant 0 : i32
    %c0_i32_1 = arith.constant 0 : i32
    return %c0_i32, %c0_i32_0 : i32, i32
  }
  func.func @transform_4(%arg0: i32) -> (i32, i32) {
    %c0_i32 = arith.constant 0 : i32
    %c0_i32_0 = arith.constant 0 : i32
    return %arg0, %c0_i32 : i32, i32
  }
}

</mosaic_0001>

<llo_original>
// kernel: tpu_custom_call.1
$region0: #{tpu_custom_call.1}
  #allocation0 [shape = 'u32[]', space=smem, size = 0x4, offset = 0x4, fixed_abs, tag = 'smem constant byte address 0x4 - core index']
  #allocation1 [shape = 'u32[144,128]{1,0:T(1,128)}', space=vmem, size = 0x12000, scoped, tag = 'internal scratch']
  %s0 = inlined_call_operand.vmem [shape: f32[512,8], index: 0, kind: input, shape index: {}]
  %s1 = inlined_call_operand.vmem [shape: f32[8,4], index: 1, kind: input, shape index: {}]
  %s2 = inlined_call_operand.vmem [shape: f32[1,4], index: 2, kind: input, shape index: {}]
  %s3 = inlined_call_operand.vmem [shape: f32[1,4], index: 3, kind: input, shape index: {}]
  %s4 = inlined_call_operand.vmem [shape: f32[512,4], index: 4, kind: output, shape index: {}]
  %s5 = sld [smem:[#allocation0]]
  $region26: #{tpu_custom_call.1} parent=0
    _
  %s7 = ssub.s32 1, %s5
  %s8 = scalar_select 0, %s7, %s5
  // Predicated region
  $region2: #{tpu_custom_call.1} parent=0 // pred_check
    _
  $region3: #{tpu_custom_call.1} parent=0 // pred_check_branch
    %10 = sbr.rel (0) target = $region5
  $region4: #{tpu_custom_call.1} parent=0 // pred_region
    _
  $region5: #{tpu_custom_call.1} parent=0 // pred_fallthru
    _
  // Predicated region
  $region6: #{tpu_custom_call.1} parent=0 // pred_check
    _
  $region7: #{tpu_custom_call.1} parent=0 // pred_check_branch
    %12 = sbr.rel (0) target = $region9
  $region8: #{tpu_custom_call.1} parent=0 // pred_region
    _
  $region9: #{tpu_custom_call.1} parent=0 // pred_fallthru
    _
  // Predicated region
  $region10: #{tpu_custom_call.1} parent=0 // pred_check
    _
  $region11: #{tpu_custom_call.1} parent=0 // pred_check_branch
    %14 = sbr.rel (0) target = $region13
  $region12: #{tpu_custom_call.1} parent=0 // pred_region
    _
  $region13: #{tpu_custom_call.1} parent=0 // pred_fallthru
    _
  // Predicated region
  $region14: #{tpu_custom_call.1} parent=0 // pred_check
    _
  $region15: #{tpu_custom_call.1} parent=0 // pred_check_branch
    %16 = sbr.rel (0) target = $region17
  $region16: #{tpu_custom_call.1} parent=0 // pred_region
    _
  $region17: #{tpu_custom_call.1} parent=0 // pred_fallthru
    _
  %v17 = vld [vmem:[%s0] sm:$0xff]
  %v18 = vld [vmem:[%s0 + $0x8] sm:$0xff]
  %v19 = vld [vmem:[%s0 + $0x10] sm:$0xff]
  %v20 = vld [vmem:[%s0 + $0x18] sm:$0xff]
  %v21 = vld [vmem:[%s0 + $0x20] sm:$0xff]
  %v22 = vld [vmem:[%s0 + $0x28] sm:$0xff]
  %v23 = vld [vmem:[%s0 + $0x30] sm:$0xff]
  %v24 = vld [vmem:[%s0 + $0x38] sm:$0xff]
  %v25 = vld [vmem:[%s0 + $0x40] sm:$0xff]
  %v26 = vld [vmem:[%s0 + $0x48] sm:$0xff]
  %v27 = vld [vmem:[%s0 + $0x50] sm:$0xff]
  %v28 = vld [vmem:[%s0 + $0x58] sm:$0xff]
  %v29 = vld [vmem:[%s0 + $0x60] sm:$0xff]
  %v30 = vld [vmem:[%s0 + $0x68] sm:$0xff]
  %v31 = vld [vmem:[%s0 + $0x70] sm:$0xff]
  %v32 = vld [vmem:[%s0 + $0x78] sm:$0xff]
  %v33 = vld [vmem:[%s0 + $0x80] sm:$0xff]
  %v34 = vld [vmem:[%s0 + $0x88] sm:$0xff]
  %v35 = vld [vmem:[%s0 + $0x90] sm:$0xff]
  %v36 = vld [vmem:[%s0 + $0x98] sm:$0xff]
  %v37 = vld [vmem:[%s0 + $0xa0] sm:$0xff]
  %v38 = vld [vmem:[%s0 + $0xa8] sm:$0xff]
  %v39 = vld [vmem:[%s0 + $0xb0] sm:$0xff]
  %v40 = vld [vmem:[%s0 + $0xb8] sm:$0xff]
  %v41 = vld [vmem:[%s0 + $0xc0] sm:$0xff]
  %v42 = vld [vmem:[%s0 + $0xc8] sm:$0xff]
  %v43 = vld [vmem:[%s0 + $0xd0] sm:$0xff]
  %v44 = vld [vmem:[%s0 + $0xd8] sm:$0xff]
  %v45 = vld [vmem:[%s0 + $0xe0] sm:$0xff]
  %v46 = vld [vmem:[%s0 + $0xe8] sm:$0xff]
  %v47 = vld [vmem:[%s0 + $0xf0] sm:$0xff]
  %v48 = vld [vmem:[%s0 + $0xf8] sm:$0xff]
  %v49 = vld [vmem:[%s0 + $0x100] sm:$0xff]
  %v50 = vld [vmem:[%s0 + $0x108] sm:$0xff]
  %v51 = vld [vmem:[%s0 + $0x110] sm:$0xff]
  %v52 = vld [vmem:[%s0 + $0x118] sm:$0xff]
  %v53 = vld [vmem:[%s0 + $0x120] sm:$0xff]
  %v54 = vld [vmem:[%s0 + $0x128] sm:$0xff]
  %v55 = vld [vmem:[%s0 + $0x130] sm:$0xff]
  %v56 = vld [vmem:[%s0 + $0x138] sm:$0xff]
  %v57 = vld [vmem:[%s0 + $0x140] sm:$0xff]
  %v58 = vld [vmem:[%s0 + $0x148] sm:$0xff]
  %v59 = vld [vmem:[%s0 + $0x150] sm:$0xff]
  %v60 = vld [vmem:[%s0 + $0x158] sm:$0xff]
  %v61 = vld [vmem:[%s0 + $0x160] sm:$0xff]
  %v62 = vld [vmem:[%s0 + $0x168] sm:$0xff]
  %v63 = vld [vmem:[%s0 + $0x170] sm:$0xff]
  %v64 = vld [vmem:[%s0 + $0x178] sm:$0xff]
  %v65 = vld [vmem:[%s0 + $0x180] sm:$0xff]
  %v66 = vld [vmem:[%s0 + $0x188] sm:$0xff]
  %v67 = vld [vmem:[%s0 + $0x190] sm:$0xff]
  %v68 = vld [vmem:[%s0 + $0x198] sm:$0xff]
  %v69 = vld [vmem:[%s0 + $0x1a0] sm:$0xff]
  %v70 = vld [vmem:[%s0 + $0x1a8] sm:$0xff]
  %v71 = vld [vmem:[%s0 + $0x1b0] sm:$0xff]
  %v72 = vld [vmem:[%s0 + $0x1b8] sm:$0xff]
  %v73 = vld [vmem:[%s0 + $0x1c0] sm:$0xff]
  %v74 = vld [vmem:[%s0 + $0x1c8] sm:$0xff]
  %v75 = vld [vmem:[%s0 + $0x1d0] sm:$0xff]
  %v76 = vld [vmem:[%s0 + $0x1d8] sm:$0xff]
  %v77 = vld [vmem:[%s0 + $0x1e0] sm:$0xff]
  %v78 = vld [vmem:[%s0 + $0x1e8] sm:$0xff]
  %v79 = vld [vmem:[%s0 + $0x1f0] sm:$0xff]
  %v80 = vld [vmem:[%s0 + $0x1f8] sm:$0xff]
  %v81 = vld [vmem:[%s1] sm:$0xff]
  %vm82 = vcmask 64512
  %v84 = vsel %vm82, %v17, 0
  %v87 = vsel %vm82, %v18, 0
  %v90 = vsel %vm82, %v19, 0
  %v93 = vsel %vm82, %v20, 0
  %v96 = vsel %vm82, %v21, 0
  %v99 = vsel %vm82, %v22, 0
  %v102 = vsel %vm82, %v23, 0
  %v105 = vsel %vm82, %v24, 0
  %v108 = vsel %vm82, %v25, 0
  %v111 = vsel %vm82, %v26, 0
  %v114 = vsel %vm82, %v27, 0
  %v117 = vsel %vm82, %v28, 0
  %v120 = vsel %vm82, %v29, 0
  %v123 = vsel %vm82, %v30, 0
  %v126 = vsel %vm82, %v31, 0
  %v129 = vsel %vm82, %v32, 0
  %v132 = vsel %vm82, %v33, 0
  %v135 = vsel %vm82, %v34, 0
  %v138 = vsel %vm82, %v35, 0
  %v141 = vsel %vm82, %v36, 0
  %v144 = vsel %vm82, %v37, 0
  %v147 = vsel %vm82, %v38, 0
  %v150 = vsel %vm82, %v39, 0
  %v153 = vsel %vm82, %v40, 0
  %v156 = vsel %vm82, %v41, 0
  %v159 = vsel %vm82, %v42, 0
  %v162 = vsel %vm82, %v43, 0
  %v165 = vsel %vm82, %v44, 0
  %v168 = vsel %vm82, %v45, 0
  %v171 = vsel %vm82, %v46, 0
  %v174 = vsel %vm82, %v47, 0
  %v177 = vsel %vm82, %v48, 0
  %v180 = vsel %vm82, %v49, 0
  %v183 = vsel %vm82, %v50, 0
  %v186 = vsel %vm82, %v51, 0
  %v189 = vsel %vm82, %v52, 0
  %v192 = vsel %vm82, %v53, 0
  %v195 = vsel %vm82, %v54, 0
  %v198 = vsel %vm82, %v55, 0
  %v201 = vsel %vm82, %v56, 0
  %v204 = vsel %vm82, %v57, 0
  %v207 = vsel %vm82, %v58, 0
  %v210 = vsel %vm82, %v59, 0
  %v213 = vsel %vm82, %v60, 0
  %v216 = vsel %vm82, %v61, 0
  %v219 = vsel %vm82, %v62, 0
  %v222 = vsel %vm82, %v63, 0
  %v225 = vsel %vm82, %v64, 0
  %v228 = vsel %vm82, %v65, 0
  %v231 = vsel %vm82, %v66, 0
  %v234 = vsel %vm82, %v67, 0
  %v237 = vsel %vm82, %v68, 0
  %v240 = vsel %vm82, %v69, 0
  %v243 = vsel %vm82, %v70, 0
  %v246 = vsel %vm82, %v71, 0
  %v249 = vsel %vm82, %v72, 0
  %v252 = vsel %vm82, %v73, 0
  %v255 = vsel %vm82, %v74, 0
  %v258 = vsel %vm82, %v75, 0
  %v261 = vsel %vm82, %v76, 0
  %v264 = vsel %vm82, %v77, 0
  %v267 = vsel %vm82, %v78, 0
  %v270 = vsel %vm82, %v79, 0
  %v273 = vsel %vm82, %v80, 0
  %275 = vmatprep.subr.mxu0 0.0
  %276 = vmatpush1.msra.mxu0 0.0
  %277 = vmatprep.subr.mxu0 0.0
  %278 = vmatpush1.msra.mxu0 0.0
  %279 = vmatprep.subr.mxu0 0.0
  %280 = vmatpush1.msra.mxu0 0.0
  %281 = vmatprep.subr.mxu0 0.0
  %282 = vmatpush1.msra.mxu0 0.0
  %283 = vmatprep.subr.mxu0 0.0
  %284 = vmatpush1.msra.mxu0 0.0
  %285 = vmatprep.subr.mxu0 0.0
  %286 = vmatpush1.msra.mxu0 0.0
  %287 = vmatprep.subr.mxu0 0.0
  %288 = vmatpush1.msra.mxu0 0.0
  %289 = vmatprep.subr.mxu0 0.0
  %290 = vmatpush1.msra.mxu0 0.0
  %291 = vmatprep.subr.mxu0 0.0
  %292 = vmatpush1.msra.mxu0 0.0
  %293 = vmatprep.subr.mxu0 0.0
  %294 = vmatpush1.msra.mxu0 0.0
  %295 = vmatprep.subr.mxu0 0.0
  %296 = vmatpush1.msra.mxu0 0.0
  %297 = vmatprep.subr.mxu0 0.0
  %298 = vmatpush1.msra.mxu0 0.0
  %299 = vmatprep.subr.mxu0 0.0
  %300 = vmatpush1.msra.mxu0 0.0
  %301 = vmatprep.subr.mxu0 0.0
  %302 = vmatpush1.msra.mxu0 0.0
  %303 = vmatprep.subr.mxu0 0.0
  %304 = vmatpush1.msra.mxu0 0.0
  %305 = vmatprep.subr.mxu0 0.0
  %306 = vmatpush1.msra.mxu0 %v81
  %307 = vmatprep.subr.mxu0 0.0
  %308 = vmatpush2.msra.mxu0 0.0
  %309 = vmatprep.subr.mxu0 0.0
  %310 = vmatpush2.msra.mxu0 0.0
  %311 = vmatprep.subr.mxu0 0.0
  %312 = vmatpush2.msra.mxu0 0.0
  %313 = vmatprep.subr.mxu0 0.0
  %314 = vmatpush2.msra.mxu0 0.0
  %315 = vmatprep.subr.mxu0 0.0
  %316 = vmatpush2.msra.mxu0 0.0
  %317 = vmatprep.subr.mxu0 0.0
  %318 = vmatpush2.msra.mxu0 0.0
  %319 = vmatprep.subr.mxu0 0.0
  %320 = vmatpush2.msra.mxu0 0.0
  %321 = vmatprep.subr.mxu0 0.0
  %322 = vmatpush2.msra.mxu0 0.0
  %323 = vmatprep.subr.mxu0 0.0
  %324 = vmatpush2.msra.mxu0 0.0
  %325 = vmatprep.subr.mxu0 0.0
  %326 = vmatpush2.msra.mxu0 0.0
  %327 = vmatprep.subr.mxu0 0.0
  %328 = vmatpush2.msra.mxu0 0.0
  %329 = vmatprep.subr.mxu0 0.0
  %330 = vmatpush2.msra.mxu0 0.0
  %331 = vmatprep.subr.mxu0 0.0
  %332 = vmatpush2.msra.mxu0 0.0
  %333 = vmatprep.subr.mxu0 0.0
  %334 = vmatpush2.msra.mxu0 0.0
  %335 = vmatprep.subr.mxu0 0.0
  %336 = vmatpush2.msra.mxu0 0.0
  %337 = vmatprep.subr.mxu0 0.0
  %338 = vmatpush2.msra.mxu0 0.0
  %339 = vmatprep.mubr.f32.mxu0 0.0
  %340 = vmatmul.mubr.f32.gmra.mxu0 %v84
  %v341 = vpop.f32.mrf.mxu0
  %v342 = vadd.f32 0.0, %v341
  %v343 = vpop.f32.mrf.mxu0
  %344 = vmatprep.mubr.f32.mxu0 0.0
  %345 = vmatmul.mubr.f32.gmra.mxu0 %v87
  %v346 = vpop.f32.mrf.mxu0
  %v347 = vadd.f32 0.0, %v346
  %v348 = vpop.f32.mrf.mxu0
  %349 = vmatprep.mubr.f32.mxu0 0.0
  %350 = vmatmul.mubr.f32.gmra.mxu0 %v90
  %v351 = vpop.f32.mrf.mxu0
  %v352 = vadd.f32 0.0, %v351
  %v353 = vpop.f32.mrf.mxu0
  %354 = vmatprep.mubr.f32.mxu0 0.0
  %355 = vmatmul.mubr.f32.gmra.mxu0 %v93
  %v356 = vpop.f32.mrf.mxu0
  %v357 = vadd.f32 0.0, %v356
  %v358 = vpop.f32.mrf.mxu0
  %359 = vmatprep.mubr.f32.mxu0 0.0
  %360 = vmatmul.mubr.f32.gmra.mxu0 %v96
  %v361 = vpop.f32.mrf.mxu0
  %v362 = vadd.f32 0.0, %v361
  %v363 = vpop.f32.mrf.mxu0
  %364 = vmatprep.mubr.f32.mxu0 0.0
  %365 = vmatmul.mubr.f32.gmra.mxu0 %v99
  %v366 = vpop.f32.mrf.mxu0
  %v367 = vadd.f32 0.0, %v366
  %v368 = vpop.f32.mrf.mxu0
  %369 = vmatprep.mubr.f32.mxu0 0.0
  %370 = vmatmul.mubr.f32.gmra.mxu0 %v102
  %v371 = vpop.f32.mrf.mxu0
  %v372 = vadd.f32 0.0, %v371
  %v373 = vpop.f32.mrf.mxu0
  %374 = vmatprep.mubr.f32.mxu0 0.0
  %375 = vmatmul.mubr.f32.gmra.mxu0 %v105
  %v376 = vpop.f32.mrf.mxu0
  %v377 = vadd.f32 0.0, %v376
  %v378 = vpop.f32.mrf.mxu0
  %379 = vmatprep.mubr.f32.mxu0 0.0
  %380 = vmatmul.mubr.f32.gmra.mxu0 %v108
  %v381 = vpop.f32.mrf.mxu0
  %v382 = vadd.f32 0.0, %v381
  %v383 = vpop.f32.mrf.mxu0
  %384 = vmatprep.mubr.f32.mxu0 0.0
  %385 = vmatmul.mubr.f32.gmra.mxu0 %v111
  %v386 = vpop.f32.mrf.mxu0
  %v387 = vadd.f32 0.0, %v386
  %v388 = vpop.f32.mrf.mxu0
  %389 = vmatprep.mubr.f32.mxu0 0.0
  %390 = vmatmul.mubr.f32.gmra.mxu0 %v114
  %v391 = vpop.f32.mrf.mxu0
  %v392 = vadd.f32 0.0, %v391
  %v393 = vpop.f32.mrf.mxu0
  %394 = vmatprep.mubr.f32.mxu0 0.0
  %395 = vmatmul.mubr.f32.gmra.mxu0 %v117
  %v396 = vpop.f32.mrf.mxu0
  %v397 = vadd.f32 0.0, %v396
  %v398 = vpop.f32.mrf.mxu0
  %399 = vmatprep.mubr.f32.mxu0 0.0
  %400 = vmatmul.mubr.f32.gmra.mxu0 %v120
  %v401 = vpop.f32.mrf.mxu0
  %v402 = vadd.f32 0.0, %v401
  %v403 = vpop.f32.mrf.mxu0
  %404 = vmatprep.mubr.f32.mxu0 0.0
  %405 = vmatmul.mubr.f32.gmra.mxu0 %v123
  %v406 = vpop.f32.mrf.mxu0
  %v407 = vadd.f32 0.0, %v406
  %v408 = vpop.f32.mrf.mxu0
  %409 = vmatprep.mubr.f32.mxu0 0.0
  %410 = vmatmul.mubr.f32.gmra.mxu0 %v126
  %v411 = vpop.f32.mrf.mxu0
  %v412 = vadd.f32 0.0, %v411
  %v413 = vpop.f32.mrf.mxu0
  %414 = vmatprep.mubr.f32.mxu0 0.0
  %415 = vmatmul.mubr.f32.gmra.mxu0 %v129
  %v416 = vpop.f32.mrf.mxu0
  %v417 = vadd.f32 0.0, %v416
  %v418 = vpop.f32.mrf.mxu0
  %419 = vmatprep.mubr.f32.mxu0 0.0
  %420 = vmatmul.mubr.f32.gmra.mxu0 %v132
  %v421 = vpop.f32.mrf.mxu0
  %v422 = vadd.f32 0.0, %v421
  %v423 = vpop.f32.mrf.mxu0
  %424 = vmatprep.mubr.f32.mxu0 0.0
  %425 = vmatmul.mubr.f32.gmra.mxu0 %v135
  %v426 = vpop.f32.mrf.mxu0
  %v427 = vadd.f32 0.0, %v426
  %v428 = vpop.f32.mrf.mxu0
  %429 = vmatprep.mubr.f32.mxu0 0.0
  %430 = vmatmul.mubr.f32.gmra.mxu0 %v138
  %v431 = vpop.f32.mrf.mxu0
  %v432 = vadd.f32 0.0, %v431
  %v433 = vpop.f32.mrf.mxu0
  %434 = vmatprep.mubr.f32.mxu0 0.0
  %435 = vmatmul.mubr.f32.gmra.mxu0 %v141
  %v436 = vpop.f32.mrf.mxu0
  %v437 = vadd.f32 0.0, %v436
  %v438 = vpop.f32.mrf.mxu0
  %439 = vmatprep.mubr.f32.mxu0 0.0
  %440 = vmatmul.mubr.f32.gmra.mxu0 %v144
  %v441 = vpop.f32.mrf.mxu0
  %v442 = vadd.f32 0.0, %v441
  %v443 = vpop.f32.mrf.mxu0
  %444 = vmatprep.mubr.f32.mxu0 0.0
  %445 = vmatmul.mubr.f32.gmra.mxu0 %v147
  %v446 = vpop.f32.mrf.mxu0
  %v447 = vadd.f32 0.0, %v446
  %v448 = vpop.f32.mrf.mxu0
  %449 = vmatprep.mubr.f32.mxu0 0.0
  %450 = vmatmul.mubr.f32.gmra.mxu0 %v150
  %v451 = vpop.f32.mrf.mxu0
  %v452 = vadd.f32 0.0, %v451
  %v453 = vpop.f32.mrf.mxu0
  %454 = vmatprep.mubr.f32.mxu0 0.0
  %455 = vmatmul.mubr.f32.gmra.mxu0 %v153
  %v456 = vpop.f32.mrf.mxu0
  %v457 = vadd.f32 0.0, %v456
  %v458 = vpop.f32.mrf.mxu0
  %459 = vmatprep.mubr.f32.mxu0 0.0
  %460 = vmatmul.mubr.f32.gmra.mxu0 %v156
  %v461 = vpop.f32.mrf.mxu0
  %v462 = vadd.f32 0.0, %v461
  %v463 = vpop.f32.mrf.mxu0
  %464 = vmatprep.mubr.f32.mxu0 0.0
  %465 = vmatmul.mubr.f32.gmra.mxu0 %v159
  %v466 = vpop.f32.mrf.mxu0
  %v467 = vadd.f32 0.0, %v466
  %v468 = vpop.f32.mrf.mxu0
  %469 = vmatprep.mubr.f32.mxu0 0.0
  %470 = vmatmul.mubr.f32.gmra.mxu0 %v162
  %v471 = vpop.f32.mrf.mxu0
  %v472 = vadd.f32 0.0, %v471
  %v473 = vpop.f32.mrf.mxu0
  %474 = vmatprep.mubr.f32.mxu0 0.0
  %475 = vmatmul.mubr.f32.gmra.mxu0 %v165
  %v476 = vpop.f32.mrf.mxu0
  %v477 = vadd.f32 0.0, %v476
  %v478 = vpop.f32.mrf.mxu0
  %479 = vmatprep.mubr.f32.mxu0 0.0
  %480 = vmatmul.mubr.f32.gmra.mxu0 %v168
  %v481 = vpop.f32.mrf.mxu0
  %v482 = vadd.f32 0.0, %v481
  %v483 = vpop.f32.mrf.mxu0
  %484 = vmatprep.mubr.f32.mxu0 0.0
  %485 = vmatmul.mubr.f32.gmra.mxu0 %v171
  %v486 = vpop.f32.mrf.mxu0
  %v487 = vadd.f32 0.0, %v486
  %v488 = vpop.f32.mrf.mxu0
  %489 = vmatprep.mubr.f32.mxu0 0.0
  %490 = vmatmul.mubr.f32.gmra.mxu0 %v174
  %v491 = vpop.f32.mrf.mxu0
  %v492 = vadd.f32 0.0, %v491
  %v493 = vpop.f32.mrf.mxu0
  %494 = vmatprep.mubr.f32.mxu0 0.0
  %495 = vmatmul.mubr.f32.gmra.mxu0 %v177
  %v496 = vpop.f32.mrf.mxu0
  %v497 = vadd.f32 0.0, %v496
  %v498 = vpop.f32.mrf.mxu0
  %499 = vmatprep.mubr.f32.mxu0 0.0
  %500 = vmatmul.mubr.f32.gmra.mxu0 %v180
  %v501 = vpop.f32.mrf.mxu0
  %v502 = vadd.f32 0.0, %v501
  %v503 = vpop.f32.mrf.mxu0
  %504 = vmatprep.mubr.f32.mxu0 0.0
  %505 = vmatmul.mubr.f32.gmra.mxu0 %v183
  %v506 = vpop.f32.mrf.mxu0
  %v507 = vadd.f32 0.0, %v506
  %v508 = vpop.f32.mrf.mxu0
  %509 = vmatprep.mubr.f32.mxu0 0.0
  %510 = vmatmul.mubr.f32.gmra.mxu0 %v186
  %v511 = vpop.f32.mrf.mxu0
  %v512 = vadd.f32 0.0, %v511
  %v513 = vpop.f32.mrf.mxu0
  %514 = vmatprep.mubr.f32.mxu0 0.0
  %515 = vmatmul.mubr.f32.gmra.mxu0 %v189
  %v516 = vpop.f32.mrf.mxu0
  %v517 = vadd.f32 0.0, %v516
  %v518 = vpop.f32.mrf.mxu0
  %519 = vmatprep.mubr.f32.mxu0 0.0
  %520 = vmatmul.mubr.f32.gmra.mxu0 %v192
  %v521 = vpop.f32.mrf.mxu0
  %v522 = vadd.f32 0.0, %v521
  %v523 = vpop.f32.mrf.mxu0
  %524 = vmatprep.mubr.f32.mxu0 0.0
  %525 = vmatmul.mubr.f32.gmra.mxu0 %v195
  %v526 = vpop.f32.mrf.mxu0
  %v527 = vadd.f32 0.0, %v526
  %v528 = vpop.f32.mrf.mxu0
  %529 = vmatprep.mubr.f32.mxu0 0.0
  %530 = vmatmul.mubr.f32.gmra.mxu0 %v198
  %v531 = vpop.f32.mrf.mxu0
  %v532 = vadd.f32 0.0, %v531
  %v533 = vpop.f32.mrf.mxu0
  %534 = vmatprep.mubr.f32.mxu0 0.0
  %535 = vmatmul.mubr.f32.gmra.mxu0 %v201
  %v536 = vpop.f32.mrf.mxu0
  %v537 = vadd.f32 0.0, %v536
  %v538 = vpop.f32.mrf.mxu0
  %539 = vmatprep.mubr.f32.mxu0 0.0
  %540 = vmatmul.mubr.f32.gmra.mxu0 %v204
  %v541 = vpop.f32.mrf.mxu0
  %v542 = vadd.f32 0.0, %v541
  %v543 = vpop.f32.mrf.mxu0
  %544 = vmatprep.mubr.f32.mxu0 0.0
  %545 = vmatmul.mubr.f32.gmra.mxu0 %v207
  %v546 = vpop.f32.mrf.mxu0
  %v547 = vadd.f32 0.0, %v546
  %v548 = vpop.f32.mrf.mxu0
  %549 = vmatprep.mubr.f32.mxu0 0.0
  %550 = vmatmul.mubr.f32.gmra.mxu0 %v210
  %v551 = vpop.f32.mrf.mxu0
  %v552 = vadd.f32 0.0, %v551
  %v553 = vpop.f32.mrf.mxu0
  %554 = vmatprep.mubr.f32.mxu0 0.0
  %555 = vmatmul.mubr.f32.gmra.mxu0 %v213
  %v556 = vpop.f32.mrf.mxu0
  %v557 = vadd.f32 0.0, %v556
  %v558 = vpop.f32.mrf.mxu0
  %559 = vmatprep.mubr.f32.mxu0 0.0
  %560 = vmatmul.mubr.f32.gmra.mxu0 %v216
  %v561 = vpop.f32.mrf.mxu0
  %v562 = vadd.f32 0.0, %v561
  %v563 = vpop.f32.mrf.mxu0
  %564 = vmatprep.mubr.f32.mxu0 0.0
  %565 = vmatmul.mubr.f32.gmra.mxu0 %v219
  %v566 = vpop.f32.mrf.mxu0
  %v567 = vadd.f32 0.0, %v566
  %v568 = vpop.f32.mrf.mxu0
  %569 = vmatprep.mubr.f32.mxu0 0.0
  %570 = vmatmul.mubr.f32.gmra.mxu0 %v222
  %v571 = vpop.f32.mrf.mxu0
  %v572 = vadd.f32 0.0, %v571
  %v573 = vpop.f32.mrf.mxu0
  %574 = vmatprep.mubr.f32.mxu0 0.0
  %575 = vmatmul.mubr.f32.gmra.mxu0 %v225
  %v576 = vpop.f32.mrf.mxu0
  %v577 = vadd.f32 0.0, %v576
  %v578 = vpop.f32.mrf.mxu0
  %579 = vmatprep.mubr.f32.mxu0 0.0
  %580 = vmatmul.mubr.f32.gmra.mxu0 %v228
  %v581 = vpop.f32.mrf.mxu0
  %v582 = vadd.f32 0.0, %v581
  %v583 = vpop.f32.mrf.mxu0
  %584 = vmatprep.mubr.f32.mxu0 0.0
  %585 = vmatmul.mubr.f32.gmra.mxu0 %v231
  %v586 = vpop.f32.mrf.mxu0
  %v587 = vadd.f32 0.0, %v586
  %v588 = vpop.f32.mrf.mxu0
  %589 = vmatprep.mubr.f32.mxu0 0.0
  %590 = vmatmul.mubr.f32.gmra.mxu0 %v234
  %v591 = vpop.f32.mrf.mxu0
  %v592 = vadd.f32 0.0, %v591
  %v593 = vpop.f32.mrf.mxu0
  %594 = vmatprep.mubr.f32.mxu0 0.0
  %595 = vmatmul.mubr.f32.gmra.mxu0 %v237
  %v596 = vpop.f32.mrf.mxu0
  %v597 = vadd.f32 0.0, %v596
  %v598 = vpop.f32.mrf.mxu0
  %599 = vmatprep.mubr.f32.mxu0 0.0
  %600 = vmatmul.mubr.f32.gmra.mxu0 %v240
  %v601 = vpop.f32.mrf.mxu0
  %v602 = vadd.f32 0.0, %v601
  %v603 = vpop.f32.mrf.mxu0
  %604 = vmatprep.mubr.f32.mxu0 0.0
  %605 = vmatmul.mubr.f32.gmra.mxu0 %v243
  %v606 = vpop.f32.mrf.mxu0
  %v607 = vadd.f32 0.0, %v606
  %v608 = vpop.f32.mrf.mxu0
  %609 = vmatprep.mubr.f32.mxu0 0.0
  %610 = vmatmul.mubr.f32.gmra.mxu0 %v246
  %v611 = vpop.f32.mrf.mxu0
  %v612 = vadd.f32 0.0, %v611
  %v613 = vpop.f32.mrf.mxu0
  %614 = vmatprep.mubr.f32.mxu0 0.0
  %615 = vmatmul.mubr.f32.gmra.mxu0 %v249
  %v616 = vpop.f32.mrf.mxu0
  %v617 = vadd.f32 0.0, %v616
  %v618 = vpop.f32.mrf.mxu0
  %619 = vmatprep.mubr.f32.mxu0 0.0
  %620 = vmatmul.mubr.f32.gmra.mxu0 %v252
  %v621 = vpop.f32.mrf.mxu0
  %v622 = vadd.f32 0.0, %v621
  %v623 = vpop.f32.mrf.mxu0
  %624 = vmatprep.mubr.f32.mxu0 0.0
  %625 = vmatmul.mubr.f32.gmra.mxu0 %v255
  %v626 = vpop.f32.mrf.mxu0
  %v627 = vadd.f32 0.0, %v626
  %v628 = vpop.f32.mrf.mxu0
  %629 = vmatprep.mubr.f32.mxu0 0.0
  %630 = vmatmul.mubr.f32.gmra.mxu0 %v258
  %v631 = vpop.f32.mrf.mxu0
  %v632 = vadd.f32 0.0, %v631
  %v633 = vpop.f32.mrf.mxu0
  %634 = vmatprep.mubr.f32.mxu0 0.0
  %635 = vmatmul.mubr.f32.gmra.mxu0 %v261
  %v636 = vpop.f32.mrf.mxu0
  %v637 = vadd.f32 0.0, %v636
  %v638 = vpop.f32.mrf.mxu0
  %639 = vmatprep.mubr.f32.mxu0 0.0
  %640 = vmatmul.mubr.f32.gmra.mxu0 %v264
  %v641 = vpop.f32.mrf.mxu0
  %v642 = vadd.f32 0.0, %v641
  %v643 = vpop.f32.mrf.mxu0
  %644 = vmatprep.mubr.f32.mxu0 0.0
  %645 = vmatmul.mubr.f32.gmra.mxu0 %v267
  %v646 = vpop.f32.mrf.mxu0
  %v647 = vadd.f32 0.0, %v646
  %v648 = vpop.f32.mrf.mxu0
  %649 = vmatprep.mubr.f32.mxu0 0.0
  %650 = vmatmul.mubr.f32.gmra.mxu0 %v270
  %v651 = vpop.f32.mrf.mxu0
  %v652 = vadd.f32 0.0, %v651
  %v653 = vpop.f32.mrf.mxu0
  %654 = vmatprep.mubr.f32.mxu0 0.0
  %655 = vmatmul.mubr.f32.gmra.mxu0 %v273
  %v656 = vpop.f32.mrf.mxu0
  %v657 = vadd.f32 0.0, %v656
  %v658 = vpop.f32.mrf.mxu0
  %659 = vdwg.mxu0
  %v660 = vld [vmem:[%s2] sm:$0x1]
  %v662 = vlaneseq
  %v663 = vshrl.u32 %v662, 7
  %v664 = vsub.s32 0, %v663
  %v665 = vrot.slane %v660, %v664
  %v667 = vmul.f32 %v342, %v665
  %v668 = vmul.f32 %v347, %v665
  %v669 = vmul.f32 %v352, %v665
  %v670 = vmul.f32 %v357, %v665
  %v671 = vmul.f32 %v362, %v665
  %v672 = vmul.f32 %v367, %v665
  %v673 = vmul.f32 %v372, %v665
  %v674 = vmul.f32 %v377, %v665
  %v675 = vmul.f32 %v382, %v665
  %v676 = vmul.f32 %v387, %v665
  %v677 = vmul.f32 %v392, %v665
  %v678 = vmul.f32 %v397, %v665
  %v679 = vmul.f32 %v402, %v665
  %v680 = vmul.f32 %v407, %v665
  %v681 = vmul.f32 %v412, %v665
  %v682 = vmul.f32 %v417, %v665
  %v683 = vmul.f32 %v422, %v665
  %v684 = vmul.f32 %v427, %v665
  %v685 = vmul.f32 %v432, %v665
  %v686 = vmul.f32 %v437, %v665
  %v687 = vmul.f32 %v442, %v665
  %v688 = vmul.f32 %v447, %v665
  %v689 = vmul.f32 %v452, %v665
  %v690 = vmul.f32 %v457, %v665
  %v691 = vmul.f32 %v462, %v665
  %v692 = vmul.f32 %v467, %v665
  %v693 = vmul.f32 %v472, %v665
  %v694 = vmul.f32 %v477, %v665
  %v695 = vmul.f32 %v482, %v665
  %v696 = vmul.f32 %v487, %v665
  %v697 = vmul.f32 %v492, %v665
  %v698 = vmul.f32 %v497, %v665
  %v699 = vmul.f32 %v502, %v665
  %v700 = vmul.f32 %v507, %v665
  %v701 = vmul.f32 %v512, %v665
  %v702 = vmul.f32 %v517, %v665
  %v703 = vmul.f32 %v522, %v665
  %v704 = vmul.f32 %v527, %v665
  %v705 = vmul.f32 %v532, %v665
  %v706 = vmul.f32 %v537, %v665
  %v707 = vmul.f32 %v542, %v665
  %v708 = vmul.f32 %v547, %v665
  %v709 = vmul.f32 %v552, %v665
  %v710 = vmul.f32 %v557, %v665
  %v711 = vmul.f32 %v562, %v665
  %v712 = vmul.f32 %v567, %v665
  %v713 = vmul.f32 %v572, %v665
  %v714 = vmul.f32 %v577, %v665
  %v715 = vmul.f32 %v582, %v665
  %v716 = vmul.f32 %v587, %v665
  %v717 = vmul.f32 %v592, %v665
  %v718 = vmul.f32 %v597, %v665
  %v719 = vmul.f32 %v602, %v665
  %v720 = vmul.f32 %v607, %v665
  %v721 = vmul.f32 %v612, %v665
  %v722 = vmul.f32 %v617, %v665
  %v723 = vmul.f32 %v622, %v665
  %v724 = vmul.f32 %v627, %v665
  %v725 = vmul.f32 %v632, %v665
  %v726 = vmul.f32 %v637, %v665
  %v727 = vmul.f32 %v642, %v665
  %v728 = vmul.f32 %v647, %v665
  %v729 = vmul.f32 %v652, %v665
  %v730 = vmul.f32 %v657, %v665
  %v731 = vld [vmem:[%s3] sm:$0x1]
  %v733 = vlaneseq
  %v734 = vshrl.u32 %v733, 7
  %v735 = vsub.s32 0, %v734
  %v736 = vrot.slane %v731, %v735
  %v738 = vadd.f32 %v667, %v736
  %v739 = vadd.f32 %v668, %v736
  %v740 = vadd.f32 %v669, %v736
  %v741 = vadd.f32 %v670, %v736
  %v742 = vadd.f32 %v671, %v736
  %v743 = vadd.f32 %v672, %v736
  %v744 = vadd.f32 %v673, %v736
  %v745 = vadd.f32 %v674, %v736
  %v746 = vadd.f32 %v675, %v736
  %v747 = vadd.f32 %v676, %v736
  %v748 = vadd.f32 %v677, %v736
  %v749 = vadd.f32 %v678, %v736
  %v750 = vadd.f32 %v679, %v736
  %v751 = vadd.f32 %v680, %v736
  %v752 = vadd.f32 %v681, %v736
  %v753 = vadd.f32 %v682, %v736
  %v754 = vadd.f32 %v683, %v736
  %v755 = vadd.f32 %v684, %v736
  %v756 = vadd.f32 %v685, %v736
  %v757 = vadd.f32 %v686, %v736
  %v758 = vadd.f32 %v687, %v736
  %v759 = vadd.f32 %v688, %v736
  %v760 = vadd.f32 %v689, %v736
  %v761 = vadd.f32 %v690, %v736
  %v762 = vadd.f32 %v691, %v736
  %v763 = vadd.f32 %v692, %v736
  %v764 = vadd.f32 %v693, %v736
  %v765 = vadd.f32 %v694, %v736
  %v766 = vadd.f32 %v695, %v736
  %v767 = vadd.f32 %v696, %v736
  %v768 = vadd.f32 %v697, %v736
  %v769 = vadd.f32 %v698, %v736
  %v770 = vadd.f32 %v699, %v736
  %v771 = vadd.f32 %v700, %v736
  %v772 = vadd.f32 %v701, %v736
  %v773 = vadd.f32 %v702, %v736
  %v774 = vadd.f32 %v703, %v736
  %v775 = vadd.f32 %v704, %v736
  %v776 = vadd.f32 %v705, %v736
  %v777 = vadd.f32 %v706, %v736
  %v778 = vadd.f32 %v707, %v736
  %v779 = vadd.f32 %v708, %v736
  %v780 = vadd.f32 %v709, %v736
  %v781 = vadd.f32 %v710, %v736
  %v782 = vadd.f32 %v711, %v736
  %v783 = vadd.f32 %v712, %v736
  %v784 = vadd.f32 %v713, %v736
  %v785 = vadd.f32 %v714, %v736
  %v786 = vadd.f32 %v715, %v736
  %v787 = vadd.f32 %v716, %v736
  %v788 = vadd.f32 %v717, %v736
  %v789 = vadd.f32 %v718, %v736
  %v790 = vadd.f32 %v719, %v736
  %v791 = vadd.f32 %v720, %v736
  %v792 = vadd.f32 %v721, %v736
  %v793 = vadd.f32 %v722, %v736
  %v794 = vadd.f32 %v723, %v736
  %v795 = vadd.f32 %v724, %v736
  %v796 = vadd.f32 %v725, %v736
  %v797 = vadd.f32 %v726, %v736
  %v798 = vadd.f32 %v727, %v736
  %v799 = vadd.f32 %v728, %v736
  %v800 = vadd.f32 %v729, %v736
  %v801 = vadd.f32 %v730, %v736
  %v802 = vmax.f32 %v738, 0.0
  %v803 = vmax.f32 %v739, 0.0
  %v804 = vmax.f32 %v740, 0.0
  %v805 = vmax.f32 %v741, 0.0
  %v806 = vmax.f32 %v742, 0.0
  %v807 = vmax.f32 %v743, 0.0
  %v808 = vmax.f32 %v744, 0.0
  %v809 = vmax.f32 %v745, 0.0
  %v810 = vmax.f32 %v746, 0.0
  %v811 = vmax.f32 %v747, 0.0
  %v812 = vmax.f32 %v748, 0.0
  %v813 = vmax.f32 %v749, 0.0
  %v814 = vmax.f32 %v750, 0.0
  %v815 = vmax.f32 %v751, 0.0
  %v816 = vmax.f32 %v752, 0.0
  %v817 = vmax.f32 %v753, 0.0
  %v818 = vmax.f32 %v754, 0.0
  %v819 = vmax.f32 %v755, 0.0
  %v820 = vmax.f32 %v756, 0.0
  %v821 = vmax.f32 %v757, 0.0
  %v822 = vmax.f32 %v758, 0.0
  %v823 = vmax.f32 %v759, 0.0
  %v824 = vmax.f32 %v760, 0.0
  %v825 = vmax.f32 %v761, 0.0
  %v826 = vmax.f32 %v762, 0.0
  %v827 = vmax.f32 %v763, 0.0
  %v828 = vmax.f32 %v764, 0.0
  %v829 = vmax.f32 %v765, 0.0
  %v830 = vmax.f32 %v766, 0.0
  %v831 = vmax.f32 %v767, 0.0
  %v832 = vmax.f32 %v768, 0.0
  %v833 = vmax.f32 %v769, 0.0
  %v834 = vmax.f32 %v770, 0.0
  %v835 = vmax.f32 %v771, 0.0
  %v836 = vmax.f32 %v772, 0.0
  %v837 = vmax.f32 %v773, 0.0
  %v838 = vmax.f32 %v774, 0.0
  %v839 = vmax.f32 %v775, 0.0
  %v840 = vmax.f32 %v776, 0.0
  %v841 = vmax.f32 %v777, 0.0
  %v842 = vmax.f32 %v778, 0.0
  %v843 = vmax.f32 %v779, 0.0
  %v844 = vmax.f32 %v780, 0.0
  %v845 = vmax.f32 %v781, 0.0
  %v846 = vmax.f32 %v782, 0.0
  %v847 = vmax.f32 %v783, 0.0
  %v848 = vmax.f32 %v784, 0.0
  %v849 = vmax.f32 %v785, 0.0
  %v850 = vmax.f32 %v786, 0.0
  %v851 = vmax.f32 %v787, 0.0
  %v852 = vmax.f32 %v788, 0.0
  %v853 = vmax.f32 %v789, 0.0
  %v854 = vmax.f32 %v790, 0.0
  %v855 = vmax.f32 %v791, 0.0
  %v856 = vmax.f32 %v792, 0.0
  %v857 = vmax.f32 %v793, 0.0
  %v858 = vmax.f32 %v794, 0.0
  %v859 = vmax.f32 %v795, 0.0
  %v860 = vmax.f32 %v796, 0.0
  %v861 = vmax.f32 %v797, 0.0
  %v862 = vmax.f32 %v798, 0.0
  %v863 = vmax.f32 %v799, 0.0
  %v864 = vmax.f32 %v800, 0.0
  %v865 = vmax.f32 %v801, 0.0
  %vm866 = vcmask 31744
  %867 = vst.msk [vmem:[%s4] sm:$0xff] %vm866, %v802
  %868 = vst.msk [vmem:[%s4 + $0x8] sm:$0xff] %vm866, %v803
  %869 = vst.msk [vmem:[%s4 + $0x10] sm:$0xff] %vm866, %v804
  %870 = vst.msk [vmem:[%s4 + $0x18] sm:$0xff] %vm866, %v805
  %871 = vst.msk [vmem:[%s4 + $0x20] sm:$0xff] %vm866, %v806
  %872 = vst.msk [vmem:[%s4 + $0x28] sm:$0xff] %vm866, %v807
  %873 = vst.msk [vmem:[%s4 + $0x30] sm:$0xff] %vm866, %v808
  %874 = vst.msk [vmem:[%s4 + $0x38] sm:$0xff] %vm866, %v809
  %875 = vst.msk [vmem:[%s4 + $0x40] sm:$0xff] %vm866, %v810
  %876 = vst.msk [vmem:[%s4 + $0x48] sm:$0xff] %vm866, %v811
  %877 = vst.msk [vmem:[%s4 + $0x50] sm:$0xff] %vm866, %v812
  %878 = vst.msk [vmem:[%s4 + $0x58] sm:$0xff] %vm866, %v813
  %879 = vst.msk [vmem:[%s4 + $0x60] sm:$0xff] %vm866, %v814
  %880 = vst.msk [vmem:[%s4 + $0x68] sm:$0xff] %vm866, %v815
  %881 = vst.msk [vmem:[%s4 + $0x70] sm:$0xff] %vm866, %v816
  %882 = vst.msk [vmem:[%s4 + $0x78] sm:$0xff] %vm866, %v817
  %883 = vst.msk [vmem:[%s4 + $0x80] sm:$0xff] %vm866, %v818
  %884 = vst.msk [vmem:[%s4 + $0x88] sm:$0xff] %vm866, %v819
  %885 = vst.msk [vmem:[%s4 + $0x90] sm:$0xff] %vm866, %v820
  %886 = vst.msk [vmem:[%s4 + $0x98] sm:$0xff] %vm866, %v821
  %887 = vst.msk [vmem:[%s4 + $0xa0] sm:$0xff] %vm866, %v822
  %888 = vst.msk [vmem:[%s4 + $0xa8] sm:$0xff] %vm866, %v823
  %889 = vst.msk [vmem:[%s4 + $0xb0] sm:$0xff] %vm866, %v824
  %890 = vst.msk [vmem:[%s4 + $0xb8] sm:$0xff] %vm866, %v825
  %891 = vst.msk [vmem:[%s4 + $0xc0] sm:$0xff] %vm866, %v826
  %892 = vst.msk [vmem:[%s4 + $0xc8] sm:$0xff] %vm866, %v827
  %893 = vst.msk [vmem:[%s4 + $0xd0] sm:$0xff] %vm866, %v828
  %894 = vst.msk [vmem:[%s4 + $0xd8] sm:$0xff] %vm866, %v829
  %895 = vst.msk [vmem:[%s4 + $0xe0] sm:$0xff] %vm866, %v830
  %896 = vst.msk [vmem:[%s4 + $0xe8] sm:$0xff] %vm866, %v831
  %897 = vst.msk [vmem:[%s4 + $0xf0] sm:$0xff] %vm866, %v832
  %898 = vst.msk [vmem:[%s4 + $0xf8] sm:$0xff] %vm866, %v833
  %899 = vst.msk [vmem:[%s4 + $0x100] sm:$0xff] %vm866, %v834
  %900 = vst.msk [vmem:[%s4 + $0x108] sm:$0xff] %vm866, %v835
  %901 = vst.msk [vmem:[%s4 + $0x110] sm:$0xff] %vm866, %v836
  %902 = vst.msk [vmem:[%s4 + $0x118] sm:$0xff] %vm866, %v837
  %903 = vst.msk [vmem:[%s4 + $0x120] sm:$0xff] %vm866, %v838
  %904 = vst.msk [vmem:[%s4 + $0x128] sm:$0xff] %vm866, %v839
  %905 = vst.msk [vmem:[%s4 + $0x130] sm:$0xff] %vm866, %v840
  %906 = vst.msk [vmem:[%s4 + $0x138] sm:$0xff] %vm866, %v841
  %907 = vst.msk [vmem:[%s4 + $0x140] sm:$0xff] %vm866, %v842
  %908 = vst.msk [vmem:[%s4 + $0x148] sm:$0xff] %vm866, %v843
  %909 = vst.msk [vmem:[%s4 + $0x150] sm:$0xff] %vm866, %v844
  %910 = vst.msk [vmem:[%s4 + $0x158] sm:$0xff] %vm866, %v845
  %911 = vst.msk [vmem:[%s4 + $0x160] sm:$0xff] %vm866, %v846
  %912 = vst.msk [vmem:[%s4 + $0x168] sm:$0xff] %vm866, %v847
  %913 = vst.msk [vmem:[%s4 + $0x170] sm:$0xff] %vm866, %v848
  %914 = vst.msk [vmem:[%s4 + $0x178] sm:$0xff] %vm866, %v849
  %915 = vst.msk [vmem:[%s4 + $0x180] sm:$0xff] %vm866, %v850
  %916 = vst.msk [vmem:[%s4 + $0x188] sm:$0xff] %vm866, %v851
  %917 = vst.msk [vmem:[%s4 + $0x190] sm:$0xff] %vm866, %v852
  %918 = vst.msk [vmem:[%s4 + $0x198] sm:$0xff] %vm866, %v853
  %919 = vst.msk [vmem:[%s4 + $0x1a0] sm:$0xff] %vm866, %v854
  %920 = vst.msk [vmem:[%s4 + $0x1a8] sm:$0xff] %vm866, %v855
  %921 = vst.msk [vmem:[%s4 + $0x1b0] sm:$0xff] %vm866, %v856
  %922 = vst.msk [vmem:[%s4 + $0x1b8] sm:$0xff] %vm866, %v857
  %923 = vst.msk [vmem:[%s4 + $0x1c0] sm:$0xff] %vm866, %v858
  %924 = vst.msk [vmem:[%s4 + $0x1c8] sm:$0xff] %vm866, %v859
  %925 = vst.msk [vmem:[%s4 + $0x1d0] sm:$0xff] %vm866, %v860
  %926 = vst.msk [vmem:[%s4 + $0x1d8] sm:$0xff] %vm866, %v861
  %927 = vst.msk [vmem:[%s4 + $0x1e0] sm:$0xff] %vm866, %v862
  %928 = vst.msk [vmem:[%s4 + $0x1e8] sm:$0xff] %vm866, %v863
  %929 = vst.msk [vmem:[%s4 + $0x1f0] sm:$0xff] %vm866, %v864
  %930 = vst.msk [vmem:[%s4 + $0x1f8] sm:$0xff] %vm866, %v865
  // Predicated region
  $region18: #{tpu_custom_call.1} parent=0 // pred_check
    _
  $region19: #{tpu_custom_call.1} parent=0 // pred_check_branch
    %932 = sbr.rel (0) target = $region21
  $region20: #{tpu_custom_call.1} parent=0 // pred_region
    _
  $region21: #{tpu_custom_call.1} parent=0 // pred_fallthru
    _
  // Predicated region
  $region22: #{tpu_custom_call.1} parent=0 // pred_check
    _
  $region23: #{tpu_custom_call.1} parent=0 // pred_check_branch
    %934 = sbr.rel (0) target = $region25
  $region24: #{tpu_custom_call.1} parent=0 // pred_region
    _
  $region25: #{tpu_custom_call.1} parent=0 // pred_fallthru
    _

</llo_original>
